<compile_context>
chip_gen: v5e
topology: v5e:2x2
jax: 0.10.0
libtpu: 0.0.40
codegen_flags: <defaults>
</compile_context>

<pallas_src>
import functools
import math

import jax
import jax.numpy as jnp
from jax import lax
from jax.experimental import pallas as pl
from jax.experimental.pallas import tpu as pltpu

NUM_CHANNELS = 16   # self.numChannels in the PyTorch module
K1 = 5              # first conv kernel size
K2 = 3              # second conv kernel size

# Conservative estimate of the kernel's full per-pixel f32 working set:
# double-buffered in/out/coords (~32 B) + R / rolled / masked slabs (~100 B) +
# (16,L) conv1 accumulator (64 B) + (9,L) conv2 rows (36 B) + temporaries/slack.
_BYTES_PER_PIXEL = 384


# ----------------------------------------------------------------------------
# Kernel: conv5x5(1->16) + ReLU + conv3x3(16->1) + ReLU, on a (1, L) lane-dense
# flattened batch tile (L = batch_tile * H * W).  Padding masks are built
# in-register from two streamed int32 coordinate rows.
# ----------------------------------------------------------------------------
def _feature_cnn_kernel(scal_ref, x_ref, xy_ref, w1_ref, b1_ref, w2_ref, out_ref,
                        *, height, width):
    """Refs:
      scal_ref : SMEM (1,)  f32     conv2 bias
      x_ref    : VMEM (1, 1, L)     raw input tile (1/max is folded into w1)
      xy_ref   : VMEM (2, L) int32  row 0 = x coordinate, row 1 = y coordinate
      w1_ref   : VMEM (16, 25)      conv1 weights * (1/global_max), kx-major cols
      b1_ref   : VMEM (16, 1)       conv1 bias
      w2_ref   : VMEM (9, 16)       conv2 weights (tap, in_channel), kx-major taps
      out_ref  : VMEM (1, 1, L)
    """
    L = x_ref.shape[2]
    H, W = height, width
    r1 = K1 // 2
    bias2 = scal_ref[0]

    x = x_ref[0]                                       # (1, L) f32
    xc = xy_ref[0:1, :]                                # (1, L) int32
    yc = xy_ref[1:2, :]                                # (1, L) int32

    # ---- conv1 --------------------------------------------------------------
    # Vertical tap shifts stacked as sublanes: R[r](i) = x(i + (r-2)*W).
    rows = []
    for r in range(K1):
        sh = (-(r - r1) * W) % L
        rows.append(x if sh == 0 else pltpu.roll(x, sh, axis=1))
    R = jnp.concatenate(rows, axis=0)                  # (5, L)

    # 'same'-padding validity, built from the coordinate rows (no streamed masks).
    xbc = jnp.broadcast_to(xc, (K1, L))                # (5, L) int32
    ybc = jnp.broadcast_to(yc, (K1, L))                # (5, L) int32
    oy = lax.broadcasted_iota(jnp.int32, (K1, L), 0) - r1
    vy_slab = (ybc + oy >= 0) & (ybc + oy < H)         # (5, L) bool

    # Horizontal tap shifts: one dense (5,L) lane roll per kx column, masked,
    # then a (16,5)@(5,L) MXU dot, accumulated over the 5 columns (no im2col
    # scratch round trip).
    w1all = w1_ref[...]                                # (16, 25)
    hacc = None
    for kxi in range(K1):
        ox = kxi - r1
        slab = R if ox == 0 else pltpu.roll(R, (-ox) % L, axis=1)
        if ox == 0:
            mask = vy_slab
        else:
            mask = vy_slab & (xbc >= -ox) & (xbc < W - ox)
        slab = jnp.where(mask, slab, 0.0)
        term = jnp.dot(w1all[:, kxi * K1:(kxi + 1) * K1], slab,
                       preferred_element_type=jnp.float32)
        hacc = term if hacc is None else hacc + term
    h = jnp.maximum(hacc + b1_ref[...], 0.0)           # (16, L)

    # ---- conv2 --------------------------------------------------------------
    # Channel contraction on the MXU: g[kx*3 + ky, i] = sum_c w2[c,ky,kx] h[c,i].
    g = jnp.dot(w2_ref[...], h, preferred_element_type=jnp.float32)   # (9, L)

    # Inner (horizontal) pass: S[r] = sum_ox vx(ox) * g_{oy=r-1, ox}(i + ox).
    xb3 = jnp.broadcast_to(xc, (K2, L))
    S = (jnp.where(xb3 >= 1, pltpu.roll(g[0:K2, :], 1, axis=1), 0.0)
         + g[K2:2 * K2, :]
         + jnp.where(xb3 < W - 1,
                     pltpu.roll(g[2 * K2:3 * K2, :], (-1) % L, axis=1), 0.0))

    # Outer (vertical) pass.  (Lane rolls wrap across image/batch boundaries,
    # but every wrapped lane is zeroed by the same validity condition as 'same'
    # zero padding, so the result is exact.)
    out = (S[1:2, :]
           + jnp.where(yc >= 1, pltpu.roll(S[0:1, :], W % L, axis=1), 0.0)
           + jnp.where(yc < H - 1, pltpu.roll(S[2:3, :], (-W) % L, axis=1), 0.0))
    out_ref[0] = jnp.maximum(out + bias2, 0.0)


# ----------------------------------------------------------------------------
# Host helpers
# ----------------------------------------------------------------------------
def _vmem_capacity_bytes():
    try:
        cap = int(pltpu.get_tpu_info().vmem_capacity_bytes)
        if cap > 0:
            return cap
    except Exception:
        pass
    return 64 * 1024 * 1024   # v7x-sized fallback: safe on every generation


def _pick_batch_tile(batch, hw, max_pixels):
    """Largest batch tile whose full working set fits the VMEM budget, preferring
    G = B/bt >= 2 (v7x megacore) and a lane-dense L (multiple of 128)."""
    feasible = [bt for bt in range(1, batch + 1)
                if batch % bt == 0 and bt * hw <= max_pixels]
    if not feasible:
        # TODO(synk): a single image exceeds the VMEM tile budget; a spatially
        # tiled variant (with halo exchange) would be needed for such sizes.
        return 1
    pref = [bt for bt in feasible if batch // bt >= 2] or feasible
    dense = [bt for bt in pref if (bt * hw) % 128 == 0] or pref
    return max(dense)


def feature_detector_cnn(images, params, number_of_patches, batch_tile=None):
    """images: (B, 1, H, W) float32 (NCHW). params in PyTorch-native shapes:
    w1 (16,1,5,5), b1 (16,), w2 (1,16,3,3), b2 (1,).
    Returns (B, P*P, (H//P)*(W//P))."""
    w1, b1, w2, b2 = params
    B, C, H, W = images.shape
    assert C == 1
    P = number_of_patches
    assert H % P == 0 and W % P == 0
    HW = H * W

    # VMEM budget for the FULL per-step working set (not just the image tile).
    vmem_cap = _vmem_capacity_bytes()
    vmem_limit = min(int(vmem_cap * 0.8), 128 * 1024 * 1024)
    tile_budget = int(vmem_cap * 0.55)                 # headroom vs. the estimate
    max_pixels = max(HW, tile_budget // _BYTES_PER_PIXEL)

    bt = batch_tile if batch_tile is not None else _pick_batch_tile(B, HW, max_pixels)
    assert B % bt == 0
    G = B // bt
    L = bt * HW

    x = images.astype(jnp.float32)

    # normaliseInputs0to1(dim=None): global max.  XLA's reduction is already at
    # the HBM roofline.  The scale is linear and precedes the first ReLU, so it
    # is folded into the conv1 weights (removes a full (1,L) VPU pass per tile).
    # Guarded against an all-zero batch (the PyTorch original would emit NaN).
    inv_max = 1.0 / jnp.maximum(jnp.max(x), jnp.float32(1e-30))

    x_flat = x.reshape(G, 1, L)

    # conv1 weights in kx-major column order (matches the kernel's slab build),
    # pre-scaled by 1/global_max.
    w1m = (jnp.transpose(w1.reshape(NUM_CHANNELS, K1, K1), (0, 2, 1))
           .reshape(NUM_CHANNELS, K1 * K1).astype(jnp.float32) * inv_max)
    b1m = b1.reshape(NUM_CHANNELS, 1).astype(jnp.float32)
    # conv2 weights as (tap, in_channel), kx-major tap order.
    w2m = (jnp.transpose(w2.reshape(NUM_CHANNELS, K2, K2), (2, 1, 0))
           .reshape(K2 * K2, NUM_CHANNELS).astype(jnp.float32))
    b2s = jnp.asarray(b2, jnp.float32).reshape(1)

    # Two int32 coordinate rows (8 B/px, grid-invariant so DMA'd once) replace
    # the 34 streamed f32 mask rows of the previous version.
    hw_idx = jnp.arange(HW, dtype=jnp.int32)
    xy = jnp.tile(jnp.stack([hw_idx % W, hw_idx // W], axis=0), (1, bt))   # (2, L)

    kernel = functools.partial(_feature_cnn_kernel, height=H, width=W)

    fmap = pl.pallas_call(
        kernel,
        out_shape=jax.ShapeDtypeStruct((G, 1, L), jnp.float32),
        grid=(G,),
        in_specs=[
            pl.BlockSpec(memory_space=pltpu.MemorySpace.SMEM),            # conv2 bias
            pl.BlockSpec((1, 1, L), lambda g: (g, 0, 0)),                 # image tile
            pl.BlockSpec((2, L), lambda g: (0, 0)),                       # x/y coords
            pl.BlockSpec((NUM_CHANNELS, K1 * K1), lambda g: (0, 0)),      # conv1 w
            pl.BlockSpec((NUM_CHANNELS, 1), lambda g: (0, 0)),            # conv1 b
            pl.BlockSpec((K2 * K2, NUM_CHANNELS), lambda g: (0, 0)),      # conv2 w
        ],
        out_specs=pl.BlockSpec((1, 1, L), lambda g: (g, 0, 0)),
        compiler_params=pltpu.CompilerParams(
            dimension_semantics=("parallel",),
            vmem_limit_bytes=vmem_limit),
    )(b2s, x_flat, xy, w1m, b1m, w2m)

    # createLinearPatches: P x P non-overlapping patches, each flattened.
    # Kept in XLA: the patch axis (ph*pw) is not lane-dense at these sizes, so
    # fusing the permutation into the kernel store buys nothing.
    ph, pw = H // P, W // P
    fmap = fmap.reshape(B, P, ph, P, pw)
    return fmap.transpose(0, 1, 3, 2, 4).reshape(B, P * P, ph * pw)


# ----------------------------------------------------------------------------
# Pure-JAX reference (for a correctness check) and parameter init
# ----------------------------------------------------------------------------
def reference_forward(images, params, number_of_patches):
    w1, b1, w2, b2 = params
    x = images.astype(jnp.float32)
    x = x / jnp.max(x)
    dn = ("NCHW", "OIHW", "NCHW")
    h = lax.conv_general_dilated(x, w1, (1, 1), "SAME", dimension_numbers=dn,
                                 precision=lax.Precision.HIGHEST)
    h = jnp.maximum(h + b1[None, :, None, None], 0.0)
    f = lax.conv_general_dilated(h, w2, (1, 1), "SAME", dimension_numbers=dn,
                                 precision=lax.Precision.HIGHEST)
    f = jnp.maximum(f + b2[None, :, None, None], 0.0)
    B, _, H, W = f.shape
    P = number_of_patches
    ph, pw = H // P, W // P
    f = f.reshape(B, P, ph, P, pw).transpose(0, 1, 3, 2, 4)
    return f.reshape(B, P * P, ph * pw)


def init_params(key):
    """nn.Conv2d default init: U(-1/sqrt(fan_in), +1/sqrt(fan_in)), PyTorch shapes."""
    k1, k2, k3, k4 = jax.random.split(key, 4)
    bound1 = 1.0 / math.sqrt(1 * K1 * K1)
    w1 = jax.random.uniform(k1, (NUM_CHANNELS, 1, K1, K1), jnp.float32, -bound1, bound1)
    b1 = jax.random.uniform(k2, (NUM_CHANNELS,), jnp.float32, -bound1, bound1)
    bound2 = 1.0 / math.sqrt(NUM_CHANNELS * K2 * K2)
    w2 = jax.random.uniform(k3, (1, NUM_CHANNELS, K2, K2), jnp.float32, -bound2, bound2)
    b2 = jax.random.uniform(k4, (1,), jnp.float32, -bound2, bound2)
    return w1, b1, w2, b2


if __name__ == "__main__":
    key = jax.random.PRNGKey(0)
    k_params, k_images = jax.random.split(key)

    params = init_params(k_params)

    B, H, W = 2, 16, 16
    number_of_patches = 4
    images = jax.random.uniform(k_images, (B, 1, H, W), jnp.float32)   # NCHW

    out = feature_detector_cnn(images, params, number_of_patches)
    out = jax.block_until_ready(out)

    expected_shape = (B, number_of_patches * number_of_patches,
                      (H // number_of_patches) * (W // number_of_patches))
    assert out.shape == expected_shape, (out.shape, expected_shape)
    assert bool(jnp.all(jnp.isfinite(out)))

    ref = reference_forward(images, params, number_of_patches)
    err = float(jnp.max(jnp.abs(out - ref)))
    assert err < 1e-2, f"mismatch vs reference, max abs err = {err}"

    print("KERNEL_OK")
</pallas_src>

<mosaic_0001>
module attributes {stable_mosaic.version = 11 : i64} {
  func.func @_feature_cnn_kernel(%arg0: i32, %arg1: memref<1xf32, #tpu.memory_space<smem>>, %arg2: memref<1x1x256xf32, #tpu.memory_space<vmem>>, %arg3: memref<2x256xi32, #tpu.memory_space<vmem>>, %arg4: memref<16x25xf32, #tpu.memory_space<vmem>>, %arg5: memref<16x1xf32, #tpu.memory_space<vmem>>, %arg6: memref<9x16xf32, #tpu.memory_space<vmem>>, %arg7: memref<1x1x256xf32, #tpu.memory_space<vmem>>) attributes {dimension_semantics = [#tpu.dimension_semantics<parallel>], iteration_bounds = array<i64: 2>, scalar_prefetch = 0 : i64, scratch_operands = 0 : i64, tpu.core_type = #tpu.core_type<tc>, window_params = [{transform_indices = @transform_0, window_bounds = array<i64: 1>}, {transform_indices = @transform_1, window_bounds = array<i64: 1, 1, 256>}, {pipeline_mode = #tpu.pipeline_mode<synchronous>, transform_indices = @transform_2, window_bounds = array<i64: 2, 256>}, {pipeline_mode = #tpu.pipeline_mode<synchronous>, transform_indices = @transform_3, window_bounds = array<i64: 16, 25>}, {pipeline_mode = #tpu.pipeline_mode<synchronous>, transform_indices = @transform_4, window_bounds = array<i64: 16, 1>}, {pipeline_mode = #tpu.pipeline_mode<synchronous>, transform_indices = @transform_5, window_bounds = array<i64: 9, 16>}, {transform_indices = @transform_6, window_bounds = array<i64: 1, 1, 256>}]} {
    %c0 = arith.constant 0 : index
    %0 = memref.load %arg1[%c0] : memref<1xf32, #tpu.memory_space<smem>>
    %c0_0 = arith.constant 0 : index
    %c0_1 = arith.constant 0 : index
    %c0_2 = arith.constant 0 : index
    %1 = vector.load %arg2[%c0_0, %c0_1, %c0_2] : memref<1x1x256xf32, #tpu.memory_space<vmem>>, vector<1x1x256xf32>
    %2 = vector.shape_cast %1 : vector<1x1x256xf32> to vector<1x256xf32>
    %c0_3 = arith.constant 0 : index
    %c0_4 = arith.constant 0 : index
    %3 = vector.load %arg3[%c0_3, %c0_4] : memref<2x256xi32, #tpu.memory_space<vmem>>, vector<1x256xi32>
    %c1 = arith.constant 1 : index
    %c0_5 = arith.constant 0 : index
    %4 = vector.load %arg3[%c1, %c0_5] : memref<2x256xi32, #tpu.memory_space<vmem>>, vector<1x256xi32>
    %c32_i32 = arith.constant 32 : i32
    %5 = tpu.dynamic_rotate %2 by %c32_i32 dim 1 : vector<1x256xf32>, i32 -> vector<1x256xf32>
    %c16_i32 = arith.constant 16 : i32
    %6 = tpu.dynamic_rotate %2 by %c16_i32 dim 1 : vector<1x256xf32>, i32 -> vector<1x256xf32>
    %c240_i32 = arith.constant 240 : i32
    %7 = tpu.dynamic_rotate %2 by %c240_i32 dim 1 : vector<1x256xf32>, i32 -> vector<1x256xf32>
    %c224_i32 = arith.constant 224 : i32
    %8 = tpu.dynamic_rotate %2 by %c224_i32 dim 1 : vector<1x256xf32>, i32 -> vector<1x256xf32>
    %9 = tpu.concatenate %5, %6, %2, %7, %8 in 0 : vector<1x256xf32>, vector<1x256xf32>, vector<1x256xf32>, vector<1x256xf32>, vector<1x256xf32> -> vector<5x256xf32>
    %10 = vector.shape_cast %3 : vector<1x256xi32> to vector<1x256xi32>
    %11 = vector.broadcast %10 : vector<1x256xi32> to vector<5x256xi32>
    %12 = vector.shape_cast %4 : vector<1x256xi32> to vector<1x256xi32>
    %13 = vector.broadcast %12 : vector<1x256xi32> to vector<5x256xi32>
    %14 = tpu.iota {dimensions = array<i32: 0>} : vector<5x256xi32>
    %c2_i32 = arith.constant 2 : i32
    %15 = vector.broadcast %c2_i32 : i32 to vector<5x256xi32>
    %16 = arith.subi %14, %15 : vector<5x256xi32>
    %17 = arith.addi %13, %16 : vector<5x256xi32>
    %c0_i32 = arith.constant 0 : i32
    %18 = vector.broadcast %c0_i32 : i32 to vector<5x256xi32>
    %19 = arith.cmpi sge, %17, %18 : vector<5x256xi32>
    %20 = arith.addi %13, %16 : vector<5x256xi32>
    %c16_i32_6 = arith.constant 16 : i32
    %21 = vector.broadcast %c16_i32_6 : i32 to vector<5x256xi32>
    %22 = arith.cmpi slt, %20, %21 : vector<5x256xi32>
    %23 = arith.andi %19, %22 : vector<5x256xi1>
    %c0_7 = arith.constant 0 : index
    %c0_8 = arith.constant 0 : index
    %24 = vector.load %arg4[%c0_7, %c0_8] : memref<16x25xf32, #tpu.memory_space<vmem>>, vector<16x25xf32>
    %c2_i32_9 = arith.constant 2 : i32
    %25 = tpu.dynamic_rotate %9 by %c2_i32_9 dim 1 : vector<5x256xf32>, i32 -> vector<5x256xf32>
    %c2_i32_10 = arith.constant 2 : i32
    %26 = vector.broadcast %c2_i32_10 : i32 to vector<5x256xi32>
    %27 = arith.cmpi sge, %11, %26 : vector<5x256xi32>
    %28 = arith.andi %23, %27 : vector<5x256xi1>
    %c18_i32 = arith.constant 18 : i32
    %29 = vector.broadcast %c18_i32 : i32 to vector<5x256xi32>
    %30 = arith.cmpi slt, %11, %29 : vector<5x256xi32>
    %31 = arith.andi %28, %30 : vector<5x256xi1>
    %cst = arith.constant 0.000000e+00 : f32
    %32 = vector.broadcast %cst : f32 to vector<5x256xf32>
    %33 = arith.select %31, %25, %32 : vector<5x256xi1>, vector<5x256xf32>
    %34 = vector.extract_strided_slice %24 {offsets = [0, 0], sizes = [16, 5], strides = [1, 1]} : vector<16x25xf32> to vector<16x5xf32>
    %cst_11 = arith.constant dense<0.000000e+00> : vector<16x256xf32>
    %35 = tpu.matmul %34, %33, %cst_11 {dimension_numbers = #tpu.dot_dimension_numbers<[1], [0], [0], [1], [0, 0, 1, 1], [], []>} : vector<16x5xf32>, vector<5x256xf32>, vector<16x256xf32> -> vector<16x256xf32>
    %c1_i32 = arith.constant 1 : i32
    %36 = tpu.dynamic_rotate %9 by %c1_i32 dim 1 : vector<5x256xf32>, i32 -> vector<5x256xf32>
    %c1_i32_12 = arith.constant 1 : i32
    %37 = vector.broadcast %c1_i32_12 : i32 to vector<5x256xi32>
    %38 = arith.cmpi sge, %11, %37 : vector<5x256xi32>
    %39 = arith.andi %23, %38 : vector<5x256xi1>
    %c17_i32 = arith.constant 17 : i32
    %40 = vector.broadcast %c17_i32 : i32 to vector<5x256xi32>
    %41 = arith.cmpi slt, %11, %40 : vector<5x256xi32>
    %42 = arith.andi %39, %41 : vector<5x256xi1>
    %cst_13 = arith.constant 0.000000e+00 : f32
    %43 = vector.broadcast %cst_13 : f32 to vector<5x256xf32>
    %44 = arith.select %42, %36, %43 : vector<5x256xi1>, vector<5x256xf32>
    %45 = vector.extract_strided_slice %24 {offsets = [0, 5], sizes = [16, 5], strides = [1, 1]} : vector<16x25xf32> to vector<16x5xf32>
    %cst_14 = arith.constant dense<0.000000e+00> : vector<16x256xf32>
    %46 = tpu.matmul %45, %44, %cst_14 {dimension_numbers = #tpu.dot_dimension_numbers<[1], [0], [0], [1], [0, 0, 1, 1], [], []>} : vector<16x5xf32>, vector<5x256xf32>, vector<16x256xf32> -> vector<16x256xf32>
    %47 = arith.addf %35, %46 : vector<16x256xf32>
    %cst_15 = arith.constant 0.000000e+00 : f32
    %48 = vector.broadcast %cst_15 : f32 to vector<5x256xf32>
    %49 = arith.select %23, %9, %48 : vector<5x256xi1>, vector<5x256xf32>
    %50 = vector.extract_strided_slice %24 {offsets = [0, 10], sizes = [16, 5], strides = [1, 1]} : vector<16x25xf32> to vector<16x5xf32>
    %cst_16 = arith.constant dense<0.000000e+00> : vector<16x256xf32>
    %51 = tpu.matmul %50, %49, %cst_16 {dimension_numbers = #tpu.dot_dimension_numbers<[1], [0], [0], [1], [0, 0, 1, 1], [], []>} : vector<16x5xf32>, vector<5x256xf32>, vector<16x256xf32> -> vector<16x256xf32>
    %52 = arith.addf %47, %51 : vector<16x256xf32>
    %c255_i32 = arith.constant 255 : i32
    %53 = tpu.dynamic_rotate %9 by %c255_i32 dim 1 : vector<5x256xf32>, i32 -> vector<5x256xf32>
    %c-1_i32 = arith.constant -1 : i32
    %54 = vector.broadcast %c-1_i32 : i32 to vector<5x256xi32>
    %55 = arith.cmpi sge, %11, %54 : vector<5x256xi32>
    %56 = arith.andi %23, %55 : vector<5x256xi1>
    %c15_i32 = arith.constant 15 : i32
    %57 = vector.broadcast %c15_i32 : i32 to vector<5x256xi32>
    %58 = arith.cmpi slt, %11, %57 : vector<5x256xi32>
    %59 = arith.andi %56, %58 : vector<5x256xi1>
    %cst_17 = arith.constant 0.000000e+00 : f32
    %60 = vector.broadcast %cst_17 : f32 to vector<5x256xf32>
    %61 = arith.select %59, %53, %60 : vector<5x256xi1>, vector<5x256xf32>
    %62 = vector.extract_strided_slice %24 {offsets = [0, 15], sizes = [16, 5], strides = [1, 1]} : vector<16x25xf32> to vector<16x5xf32>
    %cst_18 = arith.constant dense<0.000000e+00> : vector<16x256xf32>
    %63 = tpu.matmul %62, %61, %cst_18 {dimension_numbers = #tpu.dot_dimension_numbers<[1], [0], [0], [1], [0, 0, 1, 1], [], []>} : vector<16x5xf32>, vector<5x256xf32>, vector<16x256xf32> -> vector<16x256xf32>
    %64 = arith.addf %52, %63 : vector<16x256xf32>
    %c254_i32 = arith.constant 254 : i32
    %65 = tpu.dynamic_rotate %9 by %c254_i32 dim 1 : vector<5x256xf32>, i32 -> vector<5x256xf32>
    %c-2_i32 = arith.constant -2 : i32
    %66 = vector.broadcast %c-2_i32 : i32 to vector<5x256xi32>
    %67 = arith.cmpi sge, %11, %66 : vector<5x256xi32>
    %68 = arith.andi %23, %67 : vector<5x256xi1>
    %c14_i32 = arith.constant 14 : i32
    %69 = vector.broadcast %c14_i32 : i32 to vector<5x256xi32>
    %70 = arith.cmpi slt, %11, %69 : vector<5x256xi32>
    %71 = arith.andi %68, %70 : vector<5x256xi1>
    %cst_19 = arith.constant 0.000000e+00 : f32
    %72 = vector.broadcast %cst_19 : f32 to vector<5x256xf32>
    %73 = arith.select %71, %65, %72 : vector<5x256xi1>, vector<5x256xf32>
    %74 = vector.extract_strided_slice %24 {offsets = [0, 20], sizes = [16, 5], strides = [1, 1]} : vector<16x25xf32> to vector<16x5xf32>
    %cst_20 = arith.constant dense<0.000000e+00> : vector<16x256xf32>
    %75 = tpu.matmul %74, %73, %cst_20 {dimension_numbers = #tpu.dot_dimension_numbers<[1], [0], [0], [1], [0, 0, 1, 1], [], []>} : vector<16x5xf32>, vector<5x256xf32>, vector<16x256xf32> -> vector<16x256xf32>
    %76 = arith.addf %64, %75 : vector<16x256xf32>
    %c0_21 = arith.constant 0 : index
    %c0_22 = arith.constant 0 : index
    %77 = vector.load %arg5[%c0_21, %c0_22] : memref<16x1xf32, #tpu.memory_space<vmem>>, vector<16x1xf32>
    %78 = vector.broadcast %77 : vector<16x1xf32> to vector<16x256xf32>
    %79 = arith.addf %76, %78 : vector<16x256xf32>
    %cst_23 = arith.constant 0.000000e+00 : f32
    %80 = vector.broadcast %cst_23 : f32 to vector<16x256xf32>
    %81 = arith.maximumf %79, %80 : vector<16x256xf32>
    %c0_24 = arith.constant 0 : index
    %c0_25 = arith.constant 0 : index
    %82 = vector.load %arg6[%c0_24, %c0_25] : memref<9x16xf32, #tpu.memory_space<vmem>>, vector<9x16xf32>
    %cst_26 = arith.constant dense<0.000000e+00> : vector<9x256xf32>
    %83 = tpu.matmul %82, %81, %cst_26 {dimension_numbers = #tpu.dot_dimension_numbers<[1], [0], [0], [1], [0, 0, 1, 1], [], []>} : vector<9x16xf32>, vector<16x256xf32>, vector<9x256xf32> -> vector<9x256xf32>
    %84 = vector.shape_cast %3 : vector<1x256xi32> to vector<1x256xi32>
    %85 = vector.broadcast %84 : vector<1x256xi32> to vector<3x256xi32>
    %c1_i32_27 = arith.constant 1 : i32
    %86 = vector.broadcast %c1_i32_27 : i32 to vector<3x256xi32>
    %87 = arith.cmpi sge, %85, %86 : vector<3x256xi32>
    %88 = vector.extract_strided_slice %83 {offsets = [0, 0], sizes = [3, 256], strides = [1, 1]} : vector<9x256xf32> to vector<3x256xf32>
    %c1_i32_28 = arith.constant 1 : i32
    %89 = tpu.dynamic_rotate %88 by %c1_i32_28 dim 1 : vector<3x256xf32>, i32 -> vector<3x256xf32>
    %cst_29 = arith.constant 0.000000e+00 : f32
    %90 = vector.broadcast %cst_29 : f32 to vector<3x256xf32>
    %91 = arith.select %87, %89, %90 : vector<3x256xi1>, vector<3x256xf32>
    %92 = vector.extract_strided_slice %83 {offsets = [3, 0], sizes = [3, 256], strides = [1, 1]} : vector<9x256xf32> to vector<3x256xf32>
    %93 = arith.addf %91, %92 : vector<3x256xf32>
    %c15_i32_30 = arith.constant 15 : i32
    %94 = vector.broadcast %c15_i32_30 : i32 to vector<3x256xi32>
    %95 = arith.cmpi slt, %85, %94 : vector<3x256xi32>
    %96 = vector.extract_strided_slice %83 {offsets = [6, 0], sizes = [3, 256], strides = [1, 1]} : vector<9x256xf32> to vector<3x256xf32>
    %c255_i32_31 = arith.constant 255 : i32
    %97 = tpu.dynamic_rotate %96 by %c255_i32_31 dim 1 : vector<3x256xf32>, i32 -> vector<3x256xf32>
    %cst_32 = arith.constant 0.000000e+00 : f32
    %98 = vector.broadcast %cst_32 : f32 to vector<3x256xf32>
    %99 = arith.select %95, %97, %98 : vector<3x256xi1>, vector<3x256xf32>
    %100 = arith.addf %93, %99 : vector<3x256xf32>
    %101 = vector.extract_strided_slice %100 {offsets = [1, 0], sizes = [1, 256], strides = [1, 1]} : vector<3x256xf32> to vector<1x256xf32>
    %c1_i32_33 = arith.constant 1 : i32
    %102 = vector.broadcast %c1_i32_33 : i32 to vector<1x256xi32>
    %103 = arith.cmpi sge, %4, %102 : vector<1x256xi32>
    %104 = vector.extract_strided_slice %100 {offsets = [0, 0], sizes = [1, 256], strides = [1, 1]} : vector<3x256xf32> to vector<1x256xf32>
    %c16_i32_34 = arith.constant 16 : i32
    %105 = tpu.dynamic_rotate %104 by %c16_i32_34 dim 1 : vector<1x256xf32>, i32 -> vector<1x256xf32>
    %cst_35 = arith.constant 0.000000e+00 : f32
    %106 = vector.broadcast %cst_35 : f32 to vector<1x256xf32>
    %107 = arith.select %103, %105, %106 : vector<1x256xi1>, vector<1x256xf32>
    %108 = arith.addf %101, %107 : vector<1x256xf32>
    %c15_i32_36 = arith.constant 15 : i32
    %109 = vector.broadcast %c15_i32_36 : i32 to vector<1x256xi32>
    %110 = arith.cmpi slt, %4, %109 : vector<1x256xi32>
    %111 = vector.extract_strided_slice %100 {offsets = [2, 0], sizes = [1, 256], strides = [1, 1]} : vector<3x256xf32> to vector<1x256xf32>
    %c240_i32_37 = arith.constant 240 : i32
    %112 = tpu.dynamic_rotate %111 by %c240_i32_37 dim 1 : vector<1x256xf32>, i32 -> vector<1x256xf32>
    %cst_38 = arith.constant 0.000000e+00 : f32
    %113 = vector.broadcast %cst_38 : f32 to vector<1x256xf32>
    %114 = arith.select %110, %112, %113 : vector<1x256xi1>, vector<1x256xf32>
    %115 = arith.addf %108, %114 : vector<1x256xf32>
    %116 = vector.broadcast %0 : f32 to vector<1x256xf32>
    %117 = arith.addf %115, %116 : vector<1x256xf32>
    %cst_39 = arith.constant 0.000000e+00 : f32
    %118 = vector.broadcast %cst_39 : f32 to vector<1x256xf32>
    %119 = arith.maximumf %117, %118 : vector<1x256xf32>
    %c0_40 = arith.constant 0 : index
    %c0_41 = arith.constant 0 : index
    %c0_42 = arith.constant 0 : index
    %120 = vector.load %arg7[%c0_40, %c0_41, %c0_42] : memref<1x1x256xf32, #tpu.memory_space<vmem>>, vector<1x1x256xf32>
    %121 = vector.shape_cast %120 : vector<1x1x256xf32> to vector<1x256xf32>
    %122 = vector.shape_cast %119 : vector<1x256xf32> to vector<1x1x256xf32>
    tpu.vector_store %arg7[%c0_40, %c0_41, %c0_42], %122 {strides = array<i32>} : memref<1x1x256xf32, #tpu.memory_space<vmem>>, vector<1x1x256xf32>,
    return
  }
  func.func @transform_0(%arg0: i32) -> i32 {
    %c0_i32 = arith.constant 0 : i32
    %c0_i32_0 = arith.constant 0 : i32
    return %c0_i32 : i32
  }
  func.func @transform_1(%arg0: i32) -> (i32, i32, i32) {
    %c0_i32 = arith.constant 0 : i32
    %c0_i32_0 = arith.constant 0 : i32
    %c0_i32_1 = arith.constant 0 : i32
    return %arg0, %c0_i32, %c0_i32_0 : i32, i32, i32
  }
  func.func @transform_2(%arg0: i32) -> (i32, i32) {
    %c0_i32 = arith.constant 0 : i32
    %c0_i32_0 = arith.constant 0 : i32
    %c0_i32_1 = arith.constant 0 : i32
    return %c0_i32, %c0_i32_0 : i32, i32
  }
  func.func @transform_3(%arg0: i32) -> (i32, i32) {
    %c0_i32 = arith.constant 0 : i32
    %c0_i32_0 = arith.constant 0 : i32
    %c0_i32_1 = arith.constant 0 : i32
    return %c0_i32, %c0_i32_0 : i32, i32
  }
  func.func @transform_4(%arg0: i32) -> (i32, i32) {
    %c0_i32 = arith.constant 0 : i32
    %c0_i32_0 = arith.constant 0 : i32
    %c0_i32_1 = arith.constant 0 : i32
    return %c0_i32, %c0_i32_0 : i32, i32
  }
  func.func @transform_5(%arg0: i32) -> (i32, i32) {
    %c0_i32 = arith.constant 0 : i32
    %c0_i32_0 = arith.constant 0 : i32
    %c0_i32_1 = arith.constant 0 : i32
    return %c0_i32, %c0_i32_0 : i32, i32
  }
  func.func @transform_6(%arg0: i32) -> (i32, i32, i32) {
    %c0_i32 = arith.constant 0 : i32
    %c0_i32_0 = arith.constant 0 : i32
    %c0_i32_1 = arith.constant 0 : i32
    return %arg0, %c0_i32, %c0_i32_0 : i32, i32, i32
  }
}

</mosaic_0001>

<llo_original>
// kernel: tpu_custom_call.1
$region0: #{tpu_custom_call.1}
  #allocation0 [shape = 'u32[]', space=smem, size = 0x4, offset = 0x4, fixed_abs, tag = 'smem constant byte address 0x4 - core index']
  #allocation1 [shape = 'u32[72,128]{1,0:T(1,128)}', space=vmem, size = 0x9000, scoped, tag = 'internal scratch']
  #allocation2 [shape = 'f32[1]{0:T(128)S(6)}', space=smem, size = 0x200, scoped, tag = 'scoped memory for tpu_custom_call.1']
  %s0 = inlined_call_operand.<no memory space> [shape: f32[1], index: 0, kind: input, shape index: {}]
  %s1 = inlined_call_operand.hbm [shape: f32[2,1,256], index: 1, kind: input, shape index: {}]
  %s2 = inlined_call_operand.hbm [shape: s32[2,256], index: 2, kind: input, shape index: {}]
  %s3 = inlined_call_operand.vmem [shape: f32[16,25], index: 3, kind: input, shape index: {}]
  %s4 = inlined_call_operand.vmem [shape: f32[16,1], index: 4, kind: input, shape index: {}]
  %s5 = inlined_call_operand.hbm [shape: f32[9,16], index: 5, kind: input, shape index: {}]
  %s6 = inlined_call_operand.hbm [shape: f32[2,1,256], index: 6, kind: output, shape index: {}]
  %s7 = sld [smem:[#allocation0]]
  $region69: #{tpu_custom_call.1} parent=0
    _
  %s9 = ssub.s32 1, %s7
  %s10 = scalar_select 0, %s9, %s7
  %11 = sst [smem:[#allocation2]] %s0
  $region1: #{tpu_custom_call.1} parent=0
    #allocation3 [shape = 'u8[2048]{0}', space=vmem, size = 0x800, scoped, tag = 'input window, operand 1']
    #allocation4 [shape = 's32[2]{0}', space=sflag, size = 0x8, scoped, tag = 'scoped memory for tpu_custom_call.1']
    #allocation5 [shape = 's32[2]{0}', space=sflag, size = 0x8, scoped, tag = 'scoped memory for tpu_custom_call.1']
    #allocation6 [shape = 'u8[2048]{0}', space=vmem, size = 0x800, scoped, tag = 'input window, operand 2, single buffered']
    #allocation7 [shape = 's32[1]{0}', space=sflag, size = 0x4, scoped, tag = 'scoped memory for tpu_custom_call.1']
    #allocation8 [shape = 'u8[8192]{0}', space=vmem, size = 0x2000, scoped, tag = 'input window, operand 5, single buffered']
    #allocation9 [shape = 'u8[2048]{0}', space=vmem, size = 0x800, scoped, tag = 'output window, operand 0']
    %12 = vsyncpa [#allocation4], 0
    %s13 = scalar_lea.sflag [#allocation4], 1
    %14 = vsyncpa %s13, 0
    %15 = vsyncpa [#allocation7], 0
    %16 = vsyncpa [#allocation5], 0
    %s17 = scalar_lea.sflag [#allocation5], 1
    %18 = vsyncpa %s17, 0
    loop: start=0, step=1, limit=4
    $region2: #{tpu_custom_call.1} parent=1 // loop_pre_header
      _
    $region3: #{tpu_custom_call.1} parent=1 // loop_header
      %s20 = sphi 0, %s24
      %p21 = scmp.ge.s32.totalorder %s20, 4
      %s28 = sphi 0, %s28
      %s30 = sphi 0, %s28
      %s31 = sphi 0, %s30
      %s45 = sphi 0, %s31
      %s51 = sphi 0, %s53
      %s54 = sphi 0, %s51
      %s55 = sphi 0, %s54
      %s71 = sphi 0, %s55
      %s75 = sphi 0, %s75
      %s77 = sphi 0, %s75
      %s78 = sphi 0, %s77
      %s92 = sphi 0, %s78
      %s96 = sphi 0, %s96
      %s98 = sphi 0, %s96
      %s99 = sphi 0, %s98
      %s113 = sphi 0, %s99
      %s117 = sphi 0, %s117
      %s119 = sphi 0, %s117
      %s120 = sphi 0, %s119
      %s134 = sphi 0, %s120
      %s138 = sphi 0, %s138
      %s140 = sphi 0, %s138
      %s141 = sphi 0, %s140
      %s155 = sphi 0, %s141
      %s161 = sphi 0, %s163
      %s164 = sphi 0, %s161
      %s165 = sphi 0, %s164
      %s181 = sphi 0, %s165
    $region4: #{tpu_custom_call.1} parent=1 // loop_header_branch
      %23 = sbr.rel (%p21) target = $region8
    $region5: #{tpu_custom_call.1} parent=1 // loop_body
      %s25 = ssub.s32 %s20, 1
      %s26 = ssub.s32 %s20, 2
      %s27 = sadd.s32 %s20, 1
      %s29 = sadd.s32 %s28, 1
      %p32 = scmp.eq.s32.totalorder %s20, 1
      %p33 = scmp.ne.s32.totalorder %s28, %s30
      %p34 = scmp.eq.s32.totalorder %s20, 0
      %p35 = por %p33, %p34
      %p36 = scmp.ne.s32.totalorder %s28, %s30
      %p37 = scmp.eq.s32.totalorder %s25, 1
      %p38 = por %p36, %p37
      %p39 = scmp.ne.s32.totalorder %s30, %s31
      %p40 = scmp.eq.s32.totalorder %s25, 0
      %p41 = por %p39, %p40
      %p42 = scmp.ne.s32.totalorder %s30, %s31
      %p43 = scmp.eq.s32.totalorder %s26, 1
      %p44 = por %p42, %p43
      %p46 = scmp.ne.s32.totalorder %s31, %s45
      %p47 = scmp.eq.s32.totalorder %s26, 0
      %p48 = por %p46, %p47
      %s49 = ssub.s32 %s20, %s27
      %p50 = scmp.eq.s32.totalorder %s49, 0
      %s52 = sadd.s32 %s51, 1
      %s53 = scalar_select %p50, %s51, %s52
      %p56 = pneg %p50
      %p57 = scmp.eq.s32.totalorder %s20, 1
      %p58 = por %p56, %p57
      %p59 = scmp.ne.s32.totalorder %s51, %s54
      %p60 = scmp.eq.s32.totalorder %s20, 0
      %p61 = por %p59, %p60
      %p62 = scmp.ne.s32.totalorder %s51, %s54
      %p63 = scmp.eq.s32.totalorder %s25, 1
      %p64 = por %p62, %p63
      %p65 = scmp.ne.s32.totalorder %s54, %s55
      %p66 = scmp.eq.s32.totalorder %s25, 0
      %p67 = por %p65, %p66
      %p68 = scmp.ne.s32.totalorder %s54, %s55
      %p69 = scmp.eq.s32.totalorder %s26, 1
      %p70 = por %p68, %p69
      %p72 = scmp.ne.s32.totalorder %s55, %s71
      %p73 = scmp.eq.s32.totalorder %s26, 0
      %p74 = por %p72, %p73
      %s76 = sadd.s32 %s75, 1
      %p79 = scmp.eq.s32.totalorder %s20, 1
      %p80 = scmp.ne.s32.totalorder %s75, %s77
      %p81 = scmp.eq.s32.totalorder %s20, 0
      %p82 = por %p80, %p81
      %p83 = scmp.ne.s32.totalorder %s75, %s77
      %p84 = scmp.eq.s32.totalorder %s25, 1
      %p85 = por %p83, %p84
      %p86 = scmp.ne.s32.totalorder %s77, %s78
      %p87 = scmp.eq.s32.totalorder %s25, 0
      %p88 = por %p86, %p87
      %p89 = scmp.ne.s32.totalorder %s77, %s78
      %p90 = scmp.eq.s32.totalorder %s26, 1
      %p91 = por %p89, %p90
      %p93 = scmp.ne.s32.totalorder %s78, %s92
      %p94 = scmp.eq.s32.totalorder %s26, 0
      %p95 = por %p93, %p94
      %s97 = sadd.s32 %s96, 1
      %p100 = scmp.eq.s32.totalorder %s20, 1
      %p101 = scmp.ne.s32.totalorder %s96, %s98
      %p102 = scmp.eq.s32.totalorder %s20, 0
      %p103 = por %p101, %p102
      %p104 = scmp.ne.s32.totalorder %s96, %s98
      %p105 = scmp.eq.s32.totalorder %s25, 1
      %p106 = por %p104, %p105
      %p107 = scmp.ne.s32.totalorder %s98, %s99
      %p108 = scmp.eq.s32.totalorder %s25, 0
      %p109 = por %p107, %p108
      %p110 = scmp.ne.s32.totalorder %s98, %s99
      %p111 = scmp.eq.s32.totalorder %s26, 1
      %p112 = por %p110, %p111
      %p114 = scmp.ne.s32.totalorder %s99, %s113
      %p115 = scmp.eq.s32.totalorder %s26, 0
      %p116 = por %p114, %p115
      %s118 = sadd.s32 %s117, 1
      %p121 = scmp.eq.s32.totalorder %s20, 1
      %p122 = scmp.ne.s32.totalorder %s117, %s119
      %p123 = scmp.eq.s32.totalorder %s20, 0
      %p124 = por %p122, %p123
      %p125 = scmp.ne.s32.totalorder %s117, %s119
      %p126 = scmp.eq.s32.totalorder %s25, 1
      %p127 = por %p125, %p126
      %p128 = scmp.ne.s32.totalorder %s119, %s120
      %p129 = scmp.eq.s32.totalorder %s25, 0
      %p130 = por %p128, %p129
      %p131 = scmp.ne.s32.totalorder %s119, %s120
      %p132 = scmp.eq.s32.totalorder %s26, 1
      %p133 = por %p131, %p132
      %p135 = scmp.ne.s32.totalorder %s120, %s134
      %p136 = scmp.eq.s32.totalorder %s26, 0
      %p137 = por %p135, %p136
      %s139 = sadd.s32 %s138, 1
      %p142 = scmp.eq.s32.totalorder %s20, 1
      %p143 = scmp.ne.s32.totalorder %s138, %s140
      %p144 = scmp.eq.s32.totalorder %s20, 0
      %p145 = por %p143, %p144
      %p146 = scmp.ne.s32.totalorder %s138, %s140
      %p147 = scmp.eq.s32.totalorder %s25, 1
      %p148 = por %p146, %p147
      %p149 = scmp.ne.s32.totalorder %s140, %s141
      %p150 = scmp.eq.s32.totalorder %s25, 0
      %p151 = por %p149, %p150
      %p152 = scmp.ne.s32.totalorder %s140, %s141
      %p153 = scmp.eq.s32.totalorder %s26, 1
      %p154 = por %p152, %p153
      %p156 = scmp.ne.s32.totalorder %s141, %s155
      %p157 = scmp.eq.s32.totalorder %s26, 0
      %p158 = por %p156, %p157
      %s159 = ssub.s32 %s20, %s27
      %p160 = scmp.eq.s32.totalorder %s159, 0
      %s162 = sadd.s32 %s161, 1
      %s163 = scalar_select %p160, %s161, %s162
      %p166 = pneg %p160
      %p167 = scmp.eq.s32.totalorder %s20, 1
      %p168 = por %p166, %p167
      %p169 = scmp.ne.s32.totalorder %s161, %s164
      %p170 = scmp.eq.s32.totalorder %s20, 0
      %p171 = por %p169, %p170
      %p172 = scmp.ne.s32.totalorder %s161, %s164
      %p173 = scmp.eq.s32.totalorder %s25, 1
      %p174 = por %p172, %p173
      %p175 = scmp.ne.s32.totalorder %s164, %s165
      %p176 = scmp.eq.s32.totalorder %s25, 0
      %p177 = por %p175, %p176
      %p178 = scmp.ne.s32.totalorder %s164, %s165
      %p179 = scmp.eq.s32.totalorder %s26, 1
      %p180 = por %p178, %p179
      %p182 = scmp.ne.s32.totalorder %s165, %s181
      %p183 = scmp.eq.s32.totalorder %s26, 0
      %p184 = por %p182, %p183
      %p185 = scmp.le.s32.totalorder 1, %s20
      %p186 = scmp.lt.s32.totalorder %s20, 3
      %p187 = pnand %p185, %p186
      %p188 = pneg %p187
      // Predicated region
      $region9: #{tpu_custom_call.1} parent=5 // pred_check
        _
      $region10: #{tpu_custom_call.1} parent=5 // pred_check_branch
        %190 = sbr.rel (%p187) target = $region12
      $region11: #{tpu_custom_call.1} parent=5 // pred_region
        %s191 = ssub.s32 %s20, 1
        // Predicated region
        $region13: #{tpu_custom_call.1} parent=11 // pred_check
          %p192 = pneg %p41
        $region14: #{tpu_custom_call.1} parent=11 // pred_check_branch
          %194 = sbr.rel (%p192) target = $region16
        $region15: #{tpu_custom_call.1} parent=11 // pred_region
          _
        $region16: #{tpu_custom_call.1} parent=11 // pred_fallthru
          _
        // Predicated region
        $region17: #{tpu_custom_call.1} parent=11 // pred_check
          %p195 = pneg %p88
        $region18: #{tpu_custom_call.1} parent=11 // pred_check_branch
          %197 = sbr.rel (%p195) target = $region20
        $region19: #{tpu_custom_call.1} parent=11 // pred_region
          %199 = vsyncadd [#allocation7], 0
          %s201 = sshll.u32 %s2, 4
          %s202 = int_to_ptr.hbm [resolvable:$true] %s201
          %s203 = sshll.u32 [#allocation6], 4
          %s204 = int_to_ptr.vmem [resolvable:$true] %s203
          %206 = dma.hbm_to_vmem [thread:$0]  %s202, 64, %s204, [#allocation7]
        $region20: #{tpu_custom_call.1} parent=11 // pred_fallthru
          _
        // Predicated region
        $region21: #{tpu_custom_call.1} parent=11 // pred_check
          %p207 = pneg %p109
        $region22: #{tpu_custom_call.1} parent=11 // pred_check_branch
          %209 = sbr.rel (%p207) target = $region24
        $region23: #{tpu_custom_call.1} parent=11 // pred_region
          _
        $region24: #{tpu_custom_call.1} parent=11 // pred_fallthru
          _
        // Predicated region
        $region25: #{tpu_custom_call.1} parent=11 // pred_check
          %p210 = pneg %p130
        $region26: #{tpu_custom_call.1} parent=11 // pred_check_branch
          %212 = sbr.rel (%p210) target = $region28
        $region27: #{tpu_custom_call.1} parent=11 // pred_region
          _
        $region28: #{tpu_custom_call.1} parent=11 // pred_fallthru
          _
        // Predicated region
        $region29: #{tpu_custom_call.1} parent=11 // pred_check
          %p213 = pneg %p151
        $region30: #{tpu_custom_call.1} parent=11 // pred_check_branch
          %215 = sbr.rel (%p213) target = $region32
        $region31: #{tpu_custom_call.1} parent=11 // pred_region
          %217 = vsyncadd [#allocation7], 0
          %s218 = sshll.u32 %s5, 4
          %s219 = int_to_ptr.hbm [resolvable:$true] %s218
          %s220 = sshll.u32 [#allocation8], 4
          %s221 = int_to_ptr.vmem [resolvable:$true] %s220
          %226 = dma.hbm_to_vmem [thread:$0]  %s219, 256, %s221, [#allocation7], 128, 128, 8
        $region32: #{tpu_custom_call.1} parent=11 // pred_fallthru
          _
      $region12: #{tpu_custom_call.1} parent=5 // pred_fallthru
        _
      %p227 = scmp.lt.s32.totalorder %s20, 2
      // Predicated region
      $region33: #{tpu_custom_call.1} parent=5 // pred_check
        %p228 = pneg %p227
      $region34: #{tpu_custom_call.1} parent=5 // pred_check_branch
        %230 = sbr.rel (%p228) target = $region36
      $region35: #{tpu_custom_call.1} parent=5 // pred_region
        // Predicated region
        $region37: #{tpu_custom_call.1} parent=35 // pred_check
          %p231 = pneg %p61
        $region38: #{tpu_custom_call.1} parent=35 // pred_check_branch
          %233 = sbr.rel (%p231) target = $region40
        $region39: #{tpu_custom_call.1} parent=35 // pred_region
          %s234 = sand.u32 %s51, 1
          %s235 = scalar_lea.sflag [#allocation4], %s234
          %s236 = sand.u32 %s51, 1
          %s237 = smul.addr %s236, 2
          %s238 = scalar_lea.vmem [#allocation3], %s237
          %240 = vsyncadd %s235, 0
          %s241 = smul.addr %s20, 2
          %s242 = scalar_lea.hbm %s1, %s241
          %s244 = sshll.u32 %s242, 4
          %s245 = int_to_ptr.hbm [resolvable:$true] %s244
          %s246 = sshll.u32 %s238, 4
          %s247 = int_to_ptr.vmem [resolvable:$true] %s246
          %249 = dma.hbm_to_vmem [thread:$0]  %s245, 32, %s247, %s235
        $region40: #{tpu_custom_call.1} parent=35 // pred_fallthru
          _
      $region36: #{tpu_custom_call.1} parent=5 // pred_fallthru
        _
      %p250 = scmp.le.s32.totalorder 1, %s20
      %p251 = scmp.lt.s32.totalorder %s20, 3
      %p252 = pnand %p250, %p251
      %p253 = pneg %p252
      // Predicated region
      $region41: #{tpu_custom_call.1} parent=5 // pred_check
        _
      $region42: #{tpu_custom_call.1} parent=5 // pred_check_branch
        %255 = sbr.rel (%p252) target = $region44
      $region43: #{tpu_custom_call.1} parent=5 // pred_region
        %s256 = ssub.s32 %s20, 1
        %s257 = sand.u32 %s54, 1
        %s258 = scalar_lea.sflag [#allocation4], %s257
        %s259 = sand.u32 %s54, 1
        %s260 = smul.addr %s259, 2
        %s261 = scalar_lea.vmem [#allocation3], %s260
        // Predicated region
        $region45: #{tpu_custom_call.1} parent=43 // pred_check
          %p262 = pneg %p67
        $region46: #{tpu_custom_call.1} parent=43 // pred_check_branch
          %264 = sbr.rel (%p262) target = $region48
        $region47: #{tpu_custom_call.1} parent=43 // pred_region
          %266 = dma.done %s258, 32
        $region48: #{tpu_custom_call.1} parent=43 // pred_fallthru
          _
        // Predicated region
        $region49: #{tpu_custom_call.1} parent=43 // pred_check
          %p267 = pneg %p88
        $region50: #{tpu_custom_call.1} parent=43 // pred_check_branch
          %269 = sbr.rel (%p267) target = $region52
        $region51: #{tpu_custom_call.1} parent=43 // pred_region
          %271 = dma.done [#allocation7], 64
        $region52: #{tpu_custom_call.1} parent=43 // pred_fallthru
          _
        // Predicated region
        $region53: #{tpu_custom_call.1} parent=43 // pred_check
          %p272 = pneg %p151
        $region54: #{tpu_custom_call.1} parent=43 // pred_check_branch
          %274 = sbr.rel (%p272) target = $region56
        $region55: #{tpu_custom_call.1} parent=43 // pred_region
          %276 = dma.done [#allocation7], 256
        $region56: #{tpu_custom_call.1} parent=43 // pred_fallthru
          _
        %p277 = pneg %p41
        %p278 = pneg %p38
        %s279 = sand.u32 %s54, 1
        %s280 = scalar_lea.sflag [#allocation4], %s279
        %s281 = sand.u32 %s54, 1
        %s282 = smul.addr %s281, 2
        %s283 = scalar_lea.vmem [#allocation3], %s282
        %p284 = pneg %p67
        %p285 = pneg %p64
        %p286 = pneg %p88
        %p287 = pneg %p85
        %p288 = pneg %p109
        %p289 = pneg %p106
        %p290 = pneg %p130
        %p291 = pneg %p127
        %p292 = pneg %p151
        %p293 = pneg %p148
        %p294 = pneg %p177
        %p295 = pneg %p174
        %s296 = sand.u32 %s164, 1
        %s297 = scalar_lea.sflag [#allocation5], %s296
        %s298 = sand.u32 %s164, 1
        %s299 = smul.addr %s298, 2
        %s300 = scalar_lea.vmem [#allocation9], %s299
        %s301 = sld [smem:[#allocation2]]
        %v302 = vld [vmem:[%s261] sm:$0x3]
        %v303 = vld [vmem:[#allocation6] ss:$2 sm:$0x3]
        %s304 = scalar_lea.vmem [#allocation6], 1
        %v305 = vld [vmem:[%s304] ss:$2 sm:$0x3]
        %v307 = vperm.slane %v302, 0
        %v308 = vperm.slane %v302, 1
        %311 = vrot.lane.b32.xlu0 %v307, 32
        %v312 = vpop.permute.xlu0 %311
        %313 = vrot.lane.b32.xlu0 %v308, 32
        %v314 = vpop.permute.xlu0 %313
        %v315 = vlaneseq
        %v316 = vand.u32 %v315, 127
        %vm317 = vcmp.lt.s32.totalorder %v316, 32
        %v318 = vsel %vm317, %v312, %v314
        %v319 = vsel %vm317, %v314, %v312
        %320 = vrot.lane.b32.xlu0 %v307, 16
        %v321 = vpop.permute.xlu0 %320
        %322 = vrot.lane.b32.xlu0 %v308, 16
        %v323 = vpop.permute.xlu0 %322
        %vm324 = vcmp.lt.s32.totalorder %v316, 16
        %v325 = vsel %vm324, %v321, %v323
        %v326 = vsel %vm324, %v323, %v321
        %327 = vrot.lane.b32.xlu0 %v307, 112
        %v328 = vpop.permute.xlu0 %327
        %329 = vrot.lane.b32.xlu0 %v308, 112
        %v330 = vpop.permute.xlu0 %329
        %vm331 = vcmp.lt.s32.totalorder %v316, 112
        %v332 = vsel %vm331, %v328, %v330
        %v333 = vsel %vm331, %v330, %v328
        %334 = vrot.lane.b32.xlu0 %v307, 96
        %v335 = vpop.permute.xlu0 %334
        %336 = vrot.lane.b32.xlu0 %v308, 96
        %v337 = vpop.permute.xlu0 %336
        %vm338 = vcmp.lt.s32.totalorder %v316, 96
        %v339 = vsel %vm338, %v335, %v337
        %v340 = vsel %vm338, %v337, %v335
        %v343 = vrot.slane %v326, 7
        %v344 = vrot.slane %v325, 7
        %v349 = vrot.slane %v332, 5
        %v350 = vrot.slane %v333, 5
        %v355 = vrot.slane %v339, 4
        %v356 = vrot.slane %v340, 4
        %vm359 = vcmask 1040384
        %v360 = vsel %vm359, %v319, %v343
        %v361 = vsel %vm359, %v318, %v344
        %vm362 = vcmask 1041408
        %v363 = vsel %vm362, %v360, %v307
        %v364 = vsel %vm362, %v361, %v308
        %vm365 = vcmask 1042432
        %v366 = vsel %vm365, %v363, %v349
        %v367 = vsel %vm365, %v364, %v350
        %vm368 = vcmask 1043456
        %v369 = vsel %vm368, %v366, %v355
        %v370 = vsel %vm368, %v367, %v356
        %v371 = vperm.slane %v303, 0
        %v372 = vperm.slane %v303, 1
        %v373 = vperm.slane %v305, 0
        %v374 = vperm.slane %v305, 1
        %v375 = vlaneseq
        %v376 = vshrl.u32 %v375, 7
        %v377 = vsub.s32 %v376, 2
        %v378 = vadd.s32 %v373, %v377
        %v379 = vadd.s32 %v374, %v377
        %vm380 = vcmp.ge.s32.totalorder %v378, 0
        %vm381 = vcmp.ge.s32.totalorder %v379, 0
        %vm382 = vcmp.lt.s32.totalorder %v378, 16
        %vm383 = vcmp.lt.s32.totalorder %v379, 16
        %vm384 = vmand %vm380, %vm382
        %vm385 = vmand %vm381, %vm383
        %v386 = vld [vmem:[%s3] sm:$0xff]
        %v387 = vld [vmem:[%s3 + $0x8] sm:$0xff]
        %388 = vrot.lane.b32.xlu0 %v369, 2
        %v389 = vpop.permute.xlu0 %388
        %390 = vrot.lane.b32.xlu0 %v370, 2
        %v391 = vpop.permute.xlu0 %390
        %vm392 = vcmp.lt.s32.totalorder %v316, 2
        %v393 = vsel %vm392, %v389, %v391
        %v394 = vsel %vm392, %v391, %v389
        %vm395 = vcmp.ge.s32.totalorder %v371, 2
        %vm396 = vcmp.ge.s32.totalorder %v372, 2
        %vm397 = vmand %vm384, %vm395
        %vm398 = vmand %vm385, %vm396
        %vm399 = vcmp.lt.s32.totalorder %v371, 18
        %vm400 = vcmp.lt.s32.totalorder %v372, 18
        %vm401 = vmand %vm397, %vm399
        %vm402 = vmand %vm398, %vm400
        %v403 = vsel %vm401, %v394, 0.0
        %v404 = vsel %vm402, %v393, 0.0
        %405 = vrot.lane.b32.xlu0 %v369, 1
        %v406 = vpop.permute.xlu0 %405
        %407 = vrot.lane.b32.xlu0 %v370, 1
        %v408 = vpop.permute.xlu0 %407
        %vm409 = vcmp.lt.s32.totalorder %v316, 1
        %v410 = vsel %vm409, %v406, %v408
        %v411 = vsel %vm409, %v408, %v406
        %vm412 = vcmp.ge.s32.totalorder %v371, 1
        %vm413 = vcmp.ge.s32.totalorder %v372, 1
        %vm414 = vmand %vm384, %vm412
        %vm415 = vmand %vm385, %vm413
        %vm416 = vcmp.lt.s32.totalorder %v371, 17
        %vm417 = vcmp.lt.s32.totalorder %v372, 17
        %vm418 = vmand %vm414, %vm416
        %vm419 = vmand %vm415, %vm417
        %v420 = vsel %vm418, %v411, 0.0
        %v421 = vsel %vm419, %v410, 0.0
        %424 = vrot.lane.b32.xlu0 %v386, 123
        %v425 = vpop.permute.xlu0 %424
        %426 = vrot.lane.b32.xlu0 %v387, 123
        %v427 = vpop.permute.xlu0 %426
        %vm428 = vcmask 39936
        %v429 = vsel %vm428, %v425, 0
        %v431 = vsel %vm428, %v427, 0
        %vm433 = vcmask 1044480
        %v435 = vsel %vm433, %v420, 0
        %v438 = vsel %vm433, %v421, 0
        %440 = vmatpush.msra.mxu0 0.0
        %441 = vmatpush.msra.mxu0 0.0
        %442 = vmatpush.msra.mxu0 0.0
        %443 = vmatpush.msra.mxu0 0.0
        %444 = vmatpush.msra.mxu0 0.0
        %445 = vmatpush.msra.mxu0 0.0
        %446 = vmatpush.msra.mxu0 0.0
        %447 = vmatpush.msra.mxu0 0.0
        %448 = vmatpush.msra.mxu0 0.0
        %449 = vmatpush.msra.mxu0 0.0
        %450 = vmatpush.msra.mxu0 0.0
        %451 = vmatpush.msra.mxu0 0.0
        %452 = vmatpush.msra.mxu0 0.0
        %453 = vmatpush.msra.mxu0 0.0
        %454 = vmatpush.msra.mxu0 0.0
        %455 = vmatpush.msra.mxu0 %v435
        %456 = vmatmul.f32.gmra.mxu0 %v429
        %v457 = vpop.f32.mrf.mxu0
        %v458 = vadd.f32 0.0, %v457
        %459 = vmatmul.f32.gmra.mxu0 %v431
        %v460 = vpop.f32.mrf.mxu0
        %v461 = vadd.f32 0.0, %v460
        %462 = vdwg.mxu0
        %463 = vmatpush.msra.mxu0 0.0
        %464 = vmatpush.msra.mxu0 0.0
        %465 = vmatpush.msra.mxu0 0.0
        %466 = vmatpush.msra.mxu0 0.0
        %467 = vmatpush.msra.mxu0 0.0
        %468 = vmatpush.msra.mxu0 0.0
        %469 = vmatpush.msra.mxu0 0.0
        %470 = vmatpush.msra.mxu0 0.0
        %471 = vmatpush.msra.mxu0 0.0
        %472 = vmatpush.msra.mxu0 0.0
        %473 = vmatpush.msra.mxu0 0.0
        %474 = vmatpush.msra.mxu0 0.0
        %475 = vmatpush.msra.mxu0 0.0
        %476 = vmatpush.msra.mxu0 0.0
        %477 = vmatpush.msra.mxu0 0.0
        %478 = vmatpush.msra.mxu0 %v438
        %479 = vmatmul.f32.gmra.mxu0 %v429
        %v480 = vpop.f32.mrf.mxu0
        %v481 = vadd.f32 0.0, %v480
        %482 = vmatmul.f32.gmra.mxu0 %v431
        %v483 = vpop.f32.mrf.mxu0
        %v484 = vadd.f32 0.0, %v483
        %485 = vdwg.mxu0
        %v486 = vsel %vm428, %v386, 0
        %v488 = vsel %vm428, %v387, 0
        %v491 = vsel %vm433, %v403, 0
        %v494 = vsel %vm433, %v404, 0
        %496 = vmatpush.msra.mxu0 0.0
        %497 = vmatpush.msra.mxu0 0.0
        %498 = vmatpush.msra.mxu0 0.0
        %499 = vmatpush.msra.mxu0 0.0
        %500 = vmatpush.msra.mxu0 0.0
        %501 = vmatpush.msra.mxu0 0.0
        %502 = vmatpush.msra.mxu0 0.0
        %503 = vmatpush.msra.mxu0 0.0
        %504 = vmatpush.msra.mxu0 0.0
        %505 = vmatpush.msra.mxu0 0.0
        %506 = vmatpush.msra.mxu0 0.0
        %507 = vmatpush.msra.mxu0 0.0
        %508 = vmatpush.msra.mxu0 0.0
        %509 = vmatpush.msra.mxu0 0.0
        %510 = vmatpush.msra.mxu0 0.0
        %511 = vmatpush.msra.mxu0 %v491
        %512 = vmatmul.f32.gmra.mxu0 %v486
        %v513 = vpop.f32.mrf.mxu0
        %v514 = vadd.f32 %v458, %v513
        %515 = vmatmul.f32.gmra.mxu0 %v488
        %v516 = vpop.f32.mrf.mxu0
        %v517 = vadd.f32 %v461, %v516
        %518 = vdwg.mxu0
        %519 = vmatpush.msra.mxu0 0.0
        %520 = vmatpush.msra.mxu0 0.0
        %521 = vmatpush.msra.mxu0 0.0
        %522 = vmatpush.msra.mxu0 0.0
        %523 = vmatpush.msra.mxu0 0.0
        %524 = vmatpush.msra.mxu0 0.0
        %525 = vmatpush.msra.mxu0 0.0
        %526 = vmatpush.msra.mxu0 0.0
        %527 = vmatpush.msra.mxu0 0.0
        %528 = vmatpush.msra.mxu0 0.0
        %529 = vmatpush.msra.mxu0 0.0
        %530 = vmatpush.msra.mxu0 0.0
        %531 = vmatpush.msra.mxu0 0.0
        %532 = vmatpush.msra.mxu0 0.0
        %533 = vmatpush.msra.mxu0 0.0
        %534 = vmatpush.msra.mxu0 %v494
        %535 = vmatmul.f32.gmra.mxu0 %v486
        %v536 = vpop.f32.mrf.mxu0
        %v537 = vadd.f32 %v481, %v536
        %538 = vmatmul.f32.gmra.mxu0 %v488
        %v539 = vpop.f32.mrf.mxu0
        %v540 = vadd.f32 %v484, %v539
        %541 = vdwg.mxu0
        %v542 = vsel %vm384, %v369, 0.0
        %v543 = vsel %vm385, %v370, 0.0
        %544 = vrot.lane.b32.xlu0 %v386, 118
        %v545 = vpop.permute.xlu0 %544
        %546 = vrot.lane.b32.xlu0 %v387, 118
        %v547 = vpop.permute.xlu0 %546
        %v548 = vsel %vm428, %v545, 0
        %v550 = vsel %vm428, %v547, 0
        %v553 = vsel %vm433, %v542, 0
        %v556 = vsel %vm433, %v543, 0
        %558 = vmatpush.msra.mxu0 0.0
        %559 = vmatpush.msra.mxu0 0.0
        %560 = vmatpush.msra.mxu0 0.0
        %561 = vmatpush.msra.mxu0 0.0
        %562 = vmatpush.msra.mxu0 0.0
        %563 = vmatpush.msra.mxu0 0.0
        %564 = vmatpush.msra.mxu0 0.0
        %565 = vmatpush.msra.mxu0 0.0
        %566 = vmatpush.msra.mxu0 0.0
        %567 = vmatpush.msra.mxu0 0.0
        %568 = vmatpush.msra.mxu0 0.0
        %569 = vmatpush.msra.mxu0 0.0
        %570 = vmatpush.msra.mxu0 0.0
        %571 = vmatpush.msra.mxu0 0.0
        %572 = vmatpush.msra.mxu0 0.0
        %573 = vmatpush.msra.mxu0 %v553
        %574 = vmatmul.f32.gmra.mxu0 %v548
        %v575 = vpop.f32.mrf.mxu0
        %v576 = vadd.f32 0.0, %v575
        %577 = vmatmul.f32.gmra.mxu0 %v550
        %v578 = vpop.f32.mrf.mxu0
        %v579 = vadd.f32 0.0, %v578
        %580 = vdwg.mxu0
        %581 = vmatpush.msra.mxu0 0.0
        %582 = vmatpush.msra.mxu0 0.0
        %583 = vmatpush.msra.mxu0 0.0
        %584 = vmatpush.msra.mxu0 0.0
        %585 = vmatpush.msra.mxu0 0.0
        %586 = vmatpush.msra.mxu0 0.0
        %587 = vmatpush.msra.mxu0 0.0
        %588 = vmatpush.msra.mxu0 0.0
        %589 = vmatpush.msra.mxu0 0.0
        %590 = vmatpush.msra.mxu0 0.0
        %591 = vmatpush.msra.mxu0 0.0
        %592 = vmatpush.msra.mxu0 0.0
        %593 = vmatpush.msra.mxu0 0.0
        %594 = vmatpush.msra.mxu0 0.0
        %595 = vmatpush.msra.mxu0 0.0
        %596 = vmatpush.msra.mxu0 %v556
        %597 = vmatmul.f32.gmra.mxu0 %v548
        %v598 = vpop.f32.mrf.mxu0
        %v599 = vadd.f32 0.0, %v598
        %600 = vmatmul.f32.gmra.mxu0 %v550
        %v601 = vpop.f32.mrf.mxu0
        %v602 = vadd.f32 0.0, %v601
        %603 = vdwg.mxu0
        %v604 = vadd.f32 %v514, %v576
        %v605 = vadd.f32 %v537, %v599
        %v606 = vadd.f32 %v517, %v579
        %v607 = vadd.f32 %v540, %v602
        %608 = vrot.lane.b32.xlu0 %v369, 127
        %v609 = vpop.permute.xlu0 %608
        %610 = vrot.lane.b32.xlu0 %v370, 127
        %v611 = vpop.permute.xlu0 %610
        %vm612 = vcmp.lt.s32.totalorder %v316, 127
        %v613 = vsel %vm612, %v609, %v611
        %v614 = vsel %vm612, %v611, %v609
        %vm615 = vcmp.ge.s32.totalorder %v371, 4294967295
        %vm616 = vcmp.ge.s32.totalorder %v372, 4294967295
        %vm617 = vmand %vm384, %vm615
        %vm618 = vmand %vm385, %vm616
        %vm619 = vcmp.lt.s32.totalorder %v371, 15
        %vm620 = vcmp.lt.s32.totalorder %v372, 15
        %vm621 = vmand %vm617, %vm619
        %vm622 = vmand %vm618, %vm620
        %v623 = vsel %vm621, %v613, 0.0
        %v624 = vsel %vm622, %v614, 0.0
        %625 = vrot.lane.b32.xlu0 %v386, 113
        %v626 = vpop.permute.xlu0 %625
        %627 = vrot.lane.b32.xlu0 %v387, 113
        %v628 = vpop.permute.xlu0 %627
        %v629 = vsel %vm428, %v626, 0
        %v631 = vsel %vm428, %v628, 0
        %v634 = vsel %vm433, %v623, 0
        %v637 = vsel %vm433, %v624, 0
        %639 = vmatpush.msra.mxu0 0.0
        %640 = vmatpush.msra.mxu0 0.0
        %641 = vmatpush.msra.mxu0 0.0
        %642 = vmatpush.msra.mxu0 0.0
        %643 = vmatpush.msra.mxu0 0.0
        %644 = vmatpush.msra.mxu0 0.0
        %645 = vmatpush.msra.mxu0 0.0
        %646 = vmatpush.msra.mxu0 0.0
        %647 = vmatpush.msra.mxu0 0.0
        %648 = vmatpush.msra.mxu0 0.0
        %649 = vmatpush.msra.mxu0 0.0
        %650 = vmatpush.msra.mxu0 0.0
        %651 = vmatpush.msra.mxu0 0.0
        %652 = vmatpush.msra.mxu0 0.0
        %653 = vmatpush.msra.mxu0 0.0
        %654 = vmatpush.msra.mxu0 %v634
        %655 = vmatmul.f32.gmra.mxu0 %v629
        %v656 = vpop.f32.mrf.mxu0
        %v657 = vadd.f32 0.0, %v656
        %658 = vmatmul.f32.gmra.mxu0 %v631
        %v659 = vpop.f32.mrf.mxu0
        %v660 = vadd.f32 0.0, %v659
        %661 = vdwg.mxu0
        %662 = vmatpush.msra.mxu0 0.0
        %663 = vmatpush.msra.mxu0 0.0
        %664 = vmatpush.msra.mxu0 0.0
        %665 = vmatpush.msra.mxu0 0.0
        %666 = vmatpush.msra.mxu0 0.0
        %667 = vmatpush.msra.mxu0 0.0
        %668 = vmatpush.msra.mxu0 0.0
        %669 = vmatpush.msra.mxu0 0.0
        %670 = vmatpush.msra.mxu0 0.0
        %671 = vmatpush.msra.mxu0 0.0
        %672 = vmatpush.msra.mxu0 0.0
        %673 = vmatpush.msra.mxu0 0.0
        %674 = vmatpush.msra.mxu0 0.0
        %675 = vmatpush.msra.mxu0 0.0
        %676 = vmatpush.msra.mxu0 0.0
        %677 = vmatpush.msra.mxu0 %v637
        %678 = vmatmul.f32.gmra.mxu0 %v629
        %v679 = vpop.f32.mrf.mxu0
        %v680 = vadd.f32 0.0, %v679
        %681 = vmatmul.f32.gmra.mxu0 %v631
        %v682 = vpop.f32.mrf.mxu0
        %v683 = vadd.f32 0.0, %v682
        %684 = vdwg.mxu0
        %v685 = vadd.f32 %v604, %v657
        %v686 = vadd.f32 %v605, %v680
        %v687 = vadd.f32 %v606, %v660
        %v688 = vadd.f32 %v607, %v683
        %689 = vrot.lane.b32.xlu0 %v369, 126
        %v690 = vpop.permute.xlu0 %689
        %691 = vrot.lane.b32.xlu0 %v370, 126
        %v692 = vpop.permute.xlu0 %691
        %vm693 = vcmp.lt.s32.totalorder %v316, 126
        %v694 = vsel %vm693, %v690, %v692
        %v695 = vsel %vm693, %v692, %v690
        %vm696 = vcmp.ge.s32.totalorder %v371, 4294967294
        %vm697 = vcmp.ge.s32.totalorder %v372, 4294967294
        %vm698 = vmand %vm384, %vm696
        %vm699 = vmand %vm385, %vm697
        %vm700 = vcmp.lt.s32.totalorder %v371, 14
        %vm701 = vcmp.lt.s32.totalorder %v372, 14
        %vm702 = vmand %vm698, %vm700
        %vm703 = vmand %vm699, %vm701
        %v704 = vsel %vm702, %v694, 0.0
        %v705 = vsel %vm703, %v695, 0.0
        %706 = vrot.lane.b32.xlu0 %v386, 108
        %v707 = vpop.permute.xlu0 %706
        %708 = vrot.lane.b32.xlu0 %v387, 108
        %v709 = vpop.permute.xlu0 %708
        %v710 = vsel %vm428, %v707, 0
        %v712 = vsel %vm428, %v709, 0
        %v715 = vsel %vm433, %v704, 0
        %v718 = vsel %vm433, %v705, 0
        %720 = vmatpush.msra.mxu0 0.0
        %721 = vmatpush.msra.mxu0 0.0
        %722 = vmatpush.msra.mxu0 0.0
        %723 = vmatpush.msra.mxu0 0.0
        %724 = vmatpush.msra.mxu0 0.0
        %725 = vmatpush.msra.mxu0 0.0
        %726 = vmatpush.msra.mxu0 0.0
        %727 = vmatpush.msra.mxu0 0.0
        %728 = vmatpush.msra.mxu0 0.0
        %729 = vmatpush.msra.mxu0 0.0
        %730 = vmatpush.msra.mxu0 0.0
        %731 = vmatpush.msra.mxu0 0.0
        %732 = vmatpush.msra.mxu0 0.0
        %733 = vmatpush.msra.mxu0 0.0
        %734 = vmatpush.msra.mxu0 0.0
        %735 = vmatpush.msra.mxu0 %v715
        %736 = vmatmul.f32.gmra.mxu0 %v710
        %v737 = vpop.f32.mrf.mxu0
        %v738 = vadd.f32 0.0, %v737
        %739 = vmatmul.f32.gmra.mxu0 %v712
        %v740 = vpop.f32.mrf.mxu0
        %v741 = vadd.f32 0.0, %v740
        %742 = vdwg.mxu0
        %743 = vmatpush.msra.mxu0 0.0
        %744 = vmatpush.msra.mxu0 0.0
        %745 = vmatpush.msra.mxu0 0.0
        %746 = vmatpush.msra.mxu0 0.0
        %747 = vmatpush.msra.mxu0 0.0
        %748 = vmatpush.msra.mxu0 0.0
        %749 = vmatpush.msra.mxu0 0.0
        %750 = vmatpush.msra.mxu0 0.0
        %751 = vmatpush.msra.mxu0 0.0
        %752 = vmatpush.msra.mxu0 0.0
        %753 = vmatpush.msra.mxu0 0.0
        %754 = vmatpush.msra.mxu0 0.0
        %755 = vmatpush.msra.mxu0 0.0
        %756 = vmatpush.msra.mxu0 0.0
        %757 = vmatpush.msra.mxu0 0.0
        %758 = vmatpush.msra.mxu0 %v718
        %759 = vmatmul.f32.gmra.mxu0 %v710
        %v760 = vpop.f32.mrf.mxu0
        %v761 = vadd.f32 0.0, %v760
        %762 = vmatmul.f32.gmra.mxu0 %v712
        %v763 = vpop.f32.mrf.mxu0
        %v764 = vadd.f32 0.0, %v763
        %765 = vdwg.mxu0
        %v766 = vadd.f32 %v685, %v738
        %v767 = vadd.f32 %v686, %v761
        %v768 = vadd.f32 %v687, %v741
        %v769 = vadd.f32 %v688, %v764
        %v770 = vld [vmem:[%s4] sm:$0xff]
        %v771 = vld [vmem:[%s4 + $0x8] sm:$0xff]
        %773 = vset.pattern.permute.xlu0 0
        %774 = vperm.xlu0 %773, %v770
        %v775 = vpop.permute.xlu0 %774
        %778 = vset.pattern.permute.xlu0 0
        %779 = vperm.xlu0 %778, %v771
        %v780 = vpop.permute.xlu0 %779
        %v782 = vadd.f32 %v766, %v775
        %v783 = vadd.f32 %v767, %v775
        %v784 = vadd.f32 %v768, %v780
        %v785 = vadd.f32 %v769, %v780
        %v786 = vmax.f32 %v782, 0.0
        %v787 = vmax.f32 %v783, 0.0
        %v788 = vmax.f32 %v784, 0.0
        %v789 = vmax.f32 %v785, 0.0
        %v790 = vld [vmem:[#allocation8] sm:$0xff]
        %v791 = vld [vmem:[#allocation8 + $0x8] sm:$0x1]
        %vm792 = vcmask 130048
        %v794 = vsel %vm792, %v790, 0
        %v797 = vsel %vm792, %v791, 0
        %799 = vmatpush.msra.mxu0 0.0
        %800 = vmatpush.msra.mxu0 0.0
        %801 = vmatpush.msra.mxu0 0.0
        %802 = vmatpush.msra.mxu0 0.0
        %803 = vmatpush.msra.mxu0 0.0
        %804 = vmatpush.msra.mxu0 0.0
        %805 = vmatpush.msra.mxu0 0.0
        %806 = vmatpush.msra.mxu0 0.0
        %807 = vmatpush.msra.mxu0 0.0
        %808 = vmatpush.msra.mxu0 0.0
        %809 = vmatpush.msra.mxu0 0.0
        %810 = vmatpush.msra.mxu0 0.0
        %811 = vmatpush.msra.mxu0 0.0
        %812 = vmatpush.msra.mxu0 0.0
        %813 = vmatpush.msra.mxu0 %v788
        %814 = vmatpush.msra.mxu0 %v786
        %815 = vmatmul.f32.gmra.mxu0 %v794
        %v816 = vpop.f32.mrf.mxu0
        %v817 = vadd.f32 0.0, %v816
        %818 = vmatmul.f32.gmra.mxu0 %v797
        %v819 = vpop.f32.mrf.mxu0
        %v820 = vadd.f32 0.0, %v819
        %821 = vdwg.mxu0
        %822 = vmatpush.msra.mxu0 0.0
        %823 = vmatpush.msra.mxu0 0.0
        %824 = vmatpush.msra.mxu0 0.0
        %825 = vmatpush.msra.mxu0 0.0
        %826 = vmatpush.msra.mxu0 0.0
        %827 = vmatpush.msra.mxu0 0.0
        %828 = vmatpush.msra.mxu0 0.0
        %829 = vmatpush.msra.mxu0 0.0
        %830 = vmatpush.msra.mxu0 0.0
        %831 = vmatpush.msra.mxu0 0.0
        %832 = vmatpush.msra.mxu0 0.0
        %833 = vmatpush.msra.mxu0 0.0
        %834 = vmatpush.msra.mxu0 0.0
        %835 = vmatpush.msra.mxu0 0.0
        %836 = vmatpush.msra.mxu0 %v789
        %837 = vmatpush.msra.mxu0 %v787
        %838 = vmatmul.f32.gmra.mxu0 %v794
        %v839 = vpop.f32.mrf.mxu0
        %v840 = vadd.f32 0.0, %v839
        %841 = vmatmul.f32.gmra.mxu0 %v797
        %v842 = vpop.f32.mrf.mxu0
        %v843 = vadd.f32 0.0, %v842
        %844 = vdwg.mxu0
        %845 = vrot.lane.b32.xlu0 %v817, 1
        %v846 = vpop.permute.xlu0 %845
        %847 = vrot.lane.b32.xlu0 %v840, 1
        %v848 = vpop.permute.xlu0 %847
        %v849 = vsel %vm409, %v846, %v848
        %v850 = vsel %vm409, %v848, %v846
        %v851 = vsel %vm412, %v850, 0.0
        %v852 = vsel %vm413, %v849, 0.0
        %v855 = vrot.slane %v817, 3
        %v856 = vrot.slane %v840, 3
        %v859 = vadd.f32 %v851, %v855
        %v860 = vadd.f32 %v852, %v856
        %v863 = vrot.slane %v817, 6
        %v864 = vrot.slane %v820, 6
        %v865 = vsel %vm362, %v863, %v864
        %v866 = vrot.slane %v840, 6
        %v867 = vrot.slane %v843, 6
        %v868 = vsel %vm362, %v866, %v867
        %871 = vrot.lane.b32.xlu0 %v865, 127
        %v872 = vpop.permute.xlu0 %871
        %873 = vrot.lane.b32.xlu0 %v868, 127
        %v874 = vpop.permute.xlu0 %873
        %v875 = vsel %vm612, %v872, %v874
        %v876 = vsel %vm612, %v874, %v872
        %v877 = vsel %vm619, %v875, 0.0
        %v878 = vsel %vm620, %v876, 0.0
        %v879 = vadd.f32 %v859, %v877
        %v880 = vadd.f32 %v860, %v878
        %vm881 = vcmp.ge.s32.totalorder %v305, 1
        %882 = vrot.lane.b32.xlu0 %v879, 16
        %v883 = vpop.permute.xlu0 %882
        %884 = vrot.lane.b32.xlu0 %v880, 16
        %v885 = vpop.permute.xlu0 %884
        %v886 = vsel %vm324, %v883, %v885
        %v887 = vsel %vm324, %v885, %v883
        %v890 = vrot.slane %v886, 7
        %v891 = vsel %vm359, %v887, %v890
        %v893 = vsel %vm881, %v891, 0.0
        %v895 = vperm.slane %v893, 0
        %v896 = vperm.slane %v893, 1
        %v899 = vadd.f32 %v879, %v895
        %v900 = vadd.f32 %v880, %v896
        %vm901 = vcmp.lt.s32.totalorder %v305, 15
        %v904 = vrot.slane %v879, 2
        %v905 = vrot.slane %v880, 2
        %908 = vrot.lane.b32.xlu0 %v904, 112
        %v909 = vpop.permute.xlu0 %908
        %910 = vrot.lane.b32.xlu0 %v905, 112
        %v911 = vpop.permute.xlu0 %910
        %v912 = vsel %vm331, %v909, %v911
        %v913 = vsel %vm331, %v911, %v909
        %v916 = vrot.slane %v913, 7
        %v917 = vsel %vm359, %v912, %v916
        %v919 = vsel %vm901, %v917, 0.0
        %v921 = vperm.slane %v919, 0
        %v922 = vperm.slane %v919, 1
        %v925 = vadd.f32 %v899, %v921
        %v926 = vadd.f32 %v900, %v922
        %v927 = vstv %s301
        %v928 = vadd.f32 %v925, %v927
        %v929 = vadd.f32 %v926, %v927
        %v930 = vmax.f32 %v928, 0.0
        %v931 = vmax.f32 %v929, 0.0
        %934 = vst [vmem:[#allocation1] sm:$0xff] %v930
        %935 = vst [vmem:[#allocation1 + $0x9] sm:$0xff] %v931
        %s936 = scalar_lea.vmem [#allocation1], 1
        %v937 = vld [vmem:[%s936] ss:$9 sm:$0xff]
        %v939 = vlaneseq
        %vm940 = vcmp.ge.s32.totalorder %v939, 0
        %vm941 = vcmp.lt.s32.totalorder %v939, 256
        %vm942 = vmand %vm940, %vm941
        %943 = vst.msk [vmem:[%s300] sm:$0x3] %vm942, %v937
        %s944 = sand.u32 %s164, 1
        %s945 = scalar_lea.sflag [#allocation5], %s944
        %s946 = sand.u32 %s164, 1
        %s947 = smul.addr %s946, 2
        %s948 = scalar_lea.vmem [#allocation9], %s947
        // Predicated region
        $region57: #{tpu_custom_call.1} parent=43 // pred_check
          %p949 = pneg %p174
        $region58: #{tpu_custom_call.1} parent=43 // pred_check_branch
          %951 = sbr.rel (%p949) target = $region60
        $region59: #{tpu_custom_call.1} parent=43 // pred_region
          %953 = vsyncadd %s945, 0
          %s954 = smul.addr %s25, 2
          %s955 = scalar_lea.hbm %s6, %s954
          %s957 = sshll.u32 %s948, 4
          %s958 = int_to_ptr.vmem [resolvable:$true] %s957
          %s959 = sshll.u32 %s955, 4
          %s960 = int_to_ptr.hbm [resolvable:$true] %s959
          %962 = dma.vmem_to_hbm [thread:$0]  %s958, 32, %s960, %s945
        $region60: #{tpu_custom_call.1} parent=43 // pred_fallthru
          _
      $region44: #{tpu_custom_call.1} parent=5 // pred_fallthru
        _
      %p963 = scmp.le.s32.totalorder 2, %s20
      // Predicated region
      $region61: #{tpu_custom_call.1} parent=5 // pred_check
        %p964 = pneg %p963
      $region62: #{tpu_custom_call.1} parent=5 // pred_check_branch
        %966 = sbr.rel (%p964) target = $region64
      $region63: #{tpu_custom_call.1} parent=5 // pred_region
        %s967 = ssub.s32 %s20, 2
        // Predicated region
        $region65: #{tpu_custom_call.1} parent=63 // pred_check
          %p968 = pneg %p180
        $region66: #{tpu_custom_call.1} parent=63 // pred_check_branch
          %970 = sbr.rel (%p968) target = $region68
        $region67: #{tpu_custom_call.1} parent=63 // pred_region
          %s971 = sand.u32 %s165, 1
          %s972 = scalar_lea.sflag [#allocation5], %s971
          %s973 = sand.u32 %s165, 1
          %s974 = smul.addr %s973, 2
          %s975 = scalar_lea.vmem [#allocation9], %s974
          %977 = dma.done %s972, 32
        $region68: #{tpu_custom_call.1} parent=63 // pred_fallthru
          _
      $region64: #{tpu_custom_call.1} parent=5 // pred_fallthru
        _
    $region6: #{tpu_custom_call.1} parent=1 // loop_footer
      %s24 = sadd.s32 1, %s20
    $region7: #{tpu_custom_call.1} parent=1 // loop_footer_branch
      %19 = sbr.rel target = $region3
    $region8: #{tpu_custom_call.1} parent=1 // loop_exit
      _
    %978 = vsyncpa [#allocation4], 1
    %s979 = scalar_lea.sflag [#allocation4], 1
    %980 = vsyncpa %s979, 1
    %981 = vsyncpa [#allocation7], 1
    %982 = vsyncpa [#allocation5], 1
    %s983 = scalar_lea.sflag [#allocation5], 1
    %984 = vsyncpa %s983, 1

</llo_original>
